<compile_context>
chip_gen: v7x
topology: tpu7x:2x2x1
jax: 0.10.0
libtpu: 0.0.40
codegen_flags: <defaults>
</compile_context>

<pallas_src>
import functools

import jax
import jax.numpy as jnp
from jax.experimental import pallas as pl
from jax.experimental.pallas import tpu as pltpu

HIDDEN_LAYER = 64
IN_FEATURES = 4
OUT_FEATURES = 2


def _round_up(n, m):
    return ((n + m - 1) // m) * m


def _mlp_kernel(x_ref, w1_ref, b1_ref, w2_ref, b2_ref, o_ref, *, chunk):
    """One grid step: out_T = W2blk @ relu(W1blk @ x_T + b1blk) + b2blk.

    x_ref : (4P,  TILE)   packed batch: each lane column holds P batch rows
    w1_ref: (64P, 4P)     block-diagonal replication of PyTorch (out, in) W1
    b1_ref: (64P, 1)      f32
    w2_ref: (2P,  64P)    block-diagonal replication of W2
    b2_ref: (2P,  1)      f32
    o_ref : (2P,  TILE)   f32, lane-dense output slab
    """
    tile = x_ref.shape[-1]
    n_chunks = tile // chunk

    # Tiny grid-resident operands: load once per grid step, keep in vregs across chunks.
    w1 = w1_ref[...]
    w2 = w2_ref[...]
    b1 = b1_ref[...]
    b2 = b2_ref[...]

    # Inner batch-chunk loop: everything per chunk (incl. the (64P, chunk) hidden
    # activation) stays vreg-resident, avoiding VMEM spill traffic of a full-tile h.
    @pl.loop(0, n_chunks)
    def _(c):
        col = pl.multiple_of(c * chunk, chunk)                 # aligned dynamic offset
        xc = x_ref[:, pl.ds(col, chunk)]                       # (4P, chunk)
        # Layer 1 on the MXU (K = 4P); VALU only does bias + ReLU.
        h = jnp.dot(w1, xc, preferred_element_type=jnp.float32)
        h = jnp.maximum(h + b1, 0.0)
        # Layer 2 on the MXU; f32 accumulation.
        o = jnp.dot(w2, h.astype(w2.dtype), preferred_element_type=jnp.float32)
        o_ref[:, pl.ds(col, chunk)] = (o + b2).astype(o_ref.dtype)


@functools.partial(jax.jit, static_argnums=(5, 6))
def _network_forward_impl(x, w1, b1, w2, b2, tile_cols_hint, input_dtype):
    B = x.shape[0]
    assert x.shape[1] == IN_FEATURES

    compute_dtype = jnp.float32 if input_dtype is None else jnp.dtype(input_dtype)
    itemsize = jnp.dtype(compute_dtype).itemsize
    sublane = 16 if itemsize == 2 else 8

    # Pack P batch rows per lane column so the 4-wide feature axis fills a full
    # sublane tile -> dense HBM/VMEM layout and K=4P for the layer-1 MXU matmul.
    P = max(1, sublane // IN_FEATURES)                 # 2 for f32, 4 for bf16
    ncols_needed = -(-B // P)

    # Lane tile (packed columns per grid step): big to amortize per-step overhead,
    # multiple of 128, clamped so large batches give >= 2 grid steps (v7x dual TC).
    tile_cols = max(128, _round_up(int(tile_cols_hint), 128))
    tile_cols = min(tile_cols, max(128, _round_up(-(-ncols_needed // 2), 128)))

    # Inner chunk size: keep the (64P, chunk) f32 hidden activation <= ~32 vregs.
    chunk = min(max(128, 512 // P), tile_cols)
    tile_cols = _round_up(tile_cols, chunk)

    ncols = _round_up(max(ncols_needed, 1), tile_cols)
    pb = ncols * P
    grid = (ncols // tile_cols,)

    # One fused pass under jit: cast -> pad -> pack-reshape -> transpose.
    xp = x.astype(compute_dtype)
    if pb != B:
        xp = jnp.pad(xp, ((0, pb - B), (0, 0)))
    xp = xp.reshape(ncols, IN_FEATURES * P).T          # (4P, ncols), batch on lanes

    # Block-diagonal weight replication: one MXU matmul handles all P packed rows.
    eye = jnp.eye(P, dtype=jnp.float32)
    w1b = jnp.kron(eye, w1.astype(jnp.float32)).astype(compute_dtype)   # (64P, 4P)
    w2b = jnp.kron(eye, w2.astype(jnp.float32)).astype(compute_dtype)   # (2P, 64P)
    b1b = jnp.tile(b1.reshape(-1, 1).astype(jnp.float32), (P, 1))       # (64P, 1)
    b2b = jnp.tile(b2.reshape(-1, 1).astype(jnp.float32), (P, 1))       # (2P, 1)

    # Explicit VMEM budget derived from the real block shapes (double-buffered x/out
    # plus headroom); capped at 32 MiB so it is safe on v5e/v6e (128 MiB) and v7x (64 MiB).
    x_blk = IN_FEATURES * P * tile_cols * itemsize
    o_blk = max(OUT_FEATURES * P, 8) * tile_cols * 4
    vmem_limit = int(min(32 * 2**20, max(16 * 2**20, 6 * (x_blk + o_blk))))

    kernel = functools.partial(_mlp_kernel, chunk=chunk)
    out_t = pl.pallas_call(
        kernel,
        out_shape=jax.ShapeDtypeStruct((OUT_FEATURES * P, ncols), jnp.float32),
        grid=grid,
        in_specs=[
            pl.BlockSpec((IN_FEATURES * P, tile_cols), lambda i: (0, i)),  # x streamed
            pl.BlockSpec(w1b.shape, lambda i: (0, 0)),                     # W1 resident
            pl.BlockSpec(b1b.shape, lambda i: (0, 0)),                     # b1 resident
            pl.BlockSpec(w2b.shape, lambda i: (0, 0)),                     # W2 resident
            pl.BlockSpec(b2b.shape, lambda i: (0, 0)),                     # b2 resident
        ],
        out_specs=pl.BlockSpec((OUT_FEATURES * P, tile_cols), lambda i: (0, i)),
        compiler_params=pltpu.CompilerParams(
            dimension_semantics=("parallel",),       # shardable across TCs (v7x)
            vmem_limit_bytes=vmem_limit,
        ),
    )(xp, w1b, b1b, w2b, b2b)

    # Unpack: (2P, ncols) -> (pb, 2) -> drop batch padding.  (Tiny output, cheap.)
    return out_t.T.reshape(pb, OUT_FEATURES)[:B]


def network_forward(x, w1, b1, w2, b2, *, tile_b=8192, input_dtype=jnp.bfloat16):
    """Forward pass matching PyTorch Network.forward.

    x : (B, 4) activations (batch-leading, PyTorch convention)
    w1: (64, 4), w2: (2, 64)  -- PyTorch (out_features, in_features) layout
    b1: (64,) or (64, 1), b2: (2,) or (2, 1)
    tile_b: packed lane-tile width per grid step (rounded to a multiple of 128).
    input_dtype: dtype used to stream x / feed the MXU (None => pure f32 path).
    Returns (B, 2) float32.
    """
    idt = None if input_dtype is None else jnp.dtype(input_dtype)
    return _network_forward_impl(x, w1, b1, w2, b2, int(tile_b), idt)


def init_params(key):
    """PyTorch nn.Linear-style init: U(-1/sqrt(fan_in), 1/sqrt(fan_in)).
    Weights in (out, in) layout, biases 1-D (PyTorch layout)."""
    k1, k2, k3, k4 = jax.random.split(key, 4)
    bound1 = 1.0 / (IN_FEATURES ** 0.5)
    bound2 = 1.0 / (HIDDEN_LAYER ** 0.5)
    w1 = jax.random.uniform(k1, (HIDDEN_LAYER, IN_FEATURES), jnp.float32, -bound1, bound1)
    b1 = jax.random.uniform(k2, (HIDDEN_LAYER,), jnp.float32, -bound1, bound1)
    w2 = jax.random.uniform(k3, (OUT_FEATURES, HIDDEN_LAYER), jnp.float32, -bound2, bound2)
    b2 = jax.random.uniform(k4, (OUT_FEATURES,), jnp.float32, -bound2, bound2)
    return w1, b1, w2, b2


if __name__ == "__main__":
    key = jax.random.PRNGKey(0)
    k_params, k_x = jax.random.split(key)
    w1, b1, w2, b2 = init_params(k_params)

    # --- Small module-sized batch, pure f32 path ----------------------------------
    batch = 8
    x = jax.random.normal(k_x, (batch, IN_FEATURES), jnp.float32)
    out = jax.block_until_ready(network_forward(x, w1, b1, w2, b2, input_dtype=None))
    ref = jnp.maximum(x @ w1.T + b1, 0.0) @ w2.T + b2
    assert out.shape == (batch, OUT_FEATURES)
    err = float(jnp.max(jnp.abs(out - ref)))
    assert jnp.allclose(out, ref, atol=1e-3, rtol=1e-3), err   # headroom for MXU lowering

    # --- Large ragged batch: multi-step grid, padding path, default bf16 streaming --
    big = 4096 + 37                       # deliberately not a multiple of the tile
    xb = jax.random.normal(jax.random.PRNGKey(1), (big, IN_FEATURES), jnp.float32)
    out_big = jax.block_until_ready(network_forward(xb, w1, b1, w2, b2, tile_b=1024))
    q = lambda a: a.astype(jnp.bfloat16).astype(jnp.float32)   # mimic bf16 MXU operands
    h_ref = q(jnp.maximum(q(xb) @ q(w1).T + b1, 0.0))
    ref_big = h_ref @ q(w2).T + b2
    assert out_big.shape == (big, OUT_FEATURES)
    err_big = float(jnp.max(jnp.abs(out_big - ref_big)))
    assert jnp.allclose(out_big, ref_big, atol=2e-2, rtol=2e-2), err_big

    print("KERNEL_OK")
</pallas_src>

<mosaic_0001>
module attributes {stable_mosaic.version = 11 : i64} {
  func.func @_mlp_kernel(%arg0: i32, %arg1: memref<8x128xf32, #tpu.memory_space<vmem>>, %arg2: memref<128x8xf32, #tpu.memory_space<vmem>>, %arg3: memref<128x1xf32, #tpu.memory_space<vmem>>, %arg4: memref<4x128xf32, #tpu.memory_space<vmem>>, %arg5: memref<4x1xf32, #tpu.memory_space<vmem>>, %arg6: memref<4x128xf32, #tpu.memory_space<vmem>>) attributes {dimension_semantics = [#tpu.dimension_semantics<parallel>], iteration_bounds = array<i64: 1>, scalar_prefetch = 0 : i64, scratch_operands = 0 : i64, tpu.core_type = #tpu.core_type<tc>, window_params = [{transform_indices = @transform_0, window_bounds = array<i64: 8, 128>}, {pipeline_mode = #tpu.pipeline_mode<synchronous>, transform_indices = @transform_1, window_bounds = array<i64: 128, 8>}, {pipeline_mode = #tpu.pipeline_mode<synchronous>, transform_indices = @transform_2, window_bounds = array<i64: 128, 1>}, {pipeline_mode = #tpu.pipeline_mode<synchronous>, transform_indices = @transform_3, window_bounds = array<i64: 4, 128>}, {pipeline_mode = #tpu.pipeline_mode<synchronous>, transform_indices = @transform_4, window_bounds = array<i64: 4, 1>}, {transform_indices = @transform_5, window_bounds = array<i64: 4, 128>}]} {
    %c0 = arith.constant 0 : index
    %c0_0 = arith.constant 0 : index
    %0 = vector.load %arg2[%c0, %c0_0] : memref<128x8xf32, #tpu.memory_space<vmem>>, vector<128x8xf32>
    %c0_1 = arith.constant 0 : index
    %c0_2 = arith.constant 0 : index
    %1 = vector.load %arg4[%c0_1, %c0_2] : memref<4x128xf32, #tpu.memory_space<vmem>>, vector<4x128xf32>
    %c0_3 = arith.constant 0 : index
    %c0_4 = arith.constant 0 : index
    %2 = vector.load %arg3[%c0_3, %c0_4] : memref<128x1xf32, #tpu.memory_space<vmem>>, vector<128x1xf32>
    %c0_5 = arith.constant 0 : index
    %c0_6 = arith.constant 0 : index
    %3 = vector.load %arg5[%c0_5, %c0_6] : memref<4x1xf32, #tpu.memory_space<vmem>>, vector<4x1xf32>
    %c0_i32 = arith.constant 0 : i32
    %c1_i32 = arith.constant 1 : i32
    %4 = arith.muli %c0_i32, %c1_i32 : i32
    %c0_i32_7 = arith.constant 0 : i32
    %5 = arith.addi %c0_i32_7, %4 : i32
    %c128_i32 = arith.constant 128 : i32
    %6 = arith.muli %5, %c128_i32 : i32
    %7 = tpu.assume_multiple %6, 128 : i32
    %c0_8 = arith.constant 0 : index
    %8 = arith.index_cast %7 : i32 to index
    %9 = vector.load %arg1[%c0_8, %8] : memref<8x128xf32, #tpu.memory_space<vmem>>, vector<8x128xf32>
    %cst = arith.constant dense<0.000000e+00> : vector<128x128xf32>
    %10 = tpu.matmul %0, %9, %cst {dimension_numbers = #tpu.dot_dimension_numbers<[1], [0], [0], [1], [0, 0, 1, 1], [], []>} : vector<128x8xf32>, vector<8x128xf32>, vector<128x128xf32> -> vector<128x128xf32>
    %11 = vector.broadcast %2 : vector<128x1xf32> to vector<128x128xf32>
    %12 = arith.addf %10, %11 : vector<128x128xf32>
    %cst_9 = arith.constant 0.000000e+00 : f32
    %13 = vector.broadcast %cst_9 : f32 to vector<128x128xf32>
    %14 = arith.maximumf %12, %13 : vector<128x128xf32>
    %cst_10 = arith.constant dense<0.000000e+00> : vector<4x128xf32>
    %15 = tpu.matmul %1, %14, %cst_10 {dimension_numbers = #tpu.dot_dimension_numbers<[1], [0], [0], [1], [0, 0, 1, 1], [], []>} : vector<4x128xf32>, vector<128x128xf32>, vector<4x128xf32> -> vector<4x128xf32>
    %16 = vector.broadcast %3 : vector<4x1xf32> to vector<4x128xf32>
    %17 = arith.addf %15, %16 : vector<4x128xf32>
    %c0_11 = arith.constant 0 : index
    %18 = arith.index_cast %7 : i32 to index
    %19 = vector.load %arg6[%c0_11, %18] : memref<4x128xf32, #tpu.memory_space<vmem>>, vector<4x128xf32>
    tpu.vector_store %arg6[%c0_11, %18], %17 {strides = array<i32>} : memref<4x128xf32, #tpu.memory_space<vmem>>, vector<4x128xf32>,
    %c1_i32_12 = arith.constant 1 : i32
    return
  }
  func.func @transform_0(%arg0: i32) -> (i32, i32) {
    %c0_i32 = arith.constant 0 : i32
    %c0_i32_0 = arith.constant 0 : i32
    return %c0_i32, %arg0 : i32, i32
  }
  func.func @transform_1(%arg0: i32) -> (i32, i32) {
    %c0_i32 = arith.constant 0 : i32
    %c0_i32_0 = arith.constant 0 : i32
    %c0_i32_1 = arith.constant 0 : i32
    return %c0_i32, %c0_i32_0 : i32, i32
  }
  func.func @transform_2(%arg0: i32) -> (i32, i32) {
    %c0_i32 = arith.constant 0 : i32
    %c0_i32_0 = arith.constant 0 : i32
    %c0_i32_1 = arith.constant 0 : i32
    return %c0_i32, %c0_i32_0 : i32, i32
  }
  func.func @transform_3(%arg0: i32) -> (i32, i32) {
    %c0_i32 = arith.constant 0 : i32
    %c0_i32_0 = arith.constant 0 : i32
    %c0_i32_1 = arith.constant 0 : i32
    return %c0_i32, %c0_i32_0 : i32, i32
  }
  func.func @transform_4(%arg0: i32) -> (i32, i32) {
    %c0_i32 = arith.constant 0 : i32
    %c0_i32_0 = arith.constant 0 : i32
    %c0_i32_1 = arith.constant 0 : i32
    return %c0_i32, %c0_i32_0 : i32, i32
  }
  func.func @transform_5(%arg0: i32) -> (i32, i32) {
    %c0_i32 = arith.constant 0 : i32
    %c0_i32_0 = arith.constant 0 : i32
    return %c0_i32, %arg0 : i32, i32
  }
}

</mosaic_0001>

<llo_original>
// kernel: _network_forward_impl.1
$region0: #{_network_forward_impl.1}
  #allocation0 [shape = 'u32[]', space=smem, size = 0x4, offset = 0x4, fixed_abs, tag = 'smem constant byte address 0x4 - core index']
  #allocation1 [shape = 'u32[144,128]{1,0:T(1,128)}', space=vmem, size = 0x12000, scoped, tag = 'internal scratch']
  %s0 = inlined_call_operand.vmem [shape: f32[8,128], index: 0, kind: input, shape index: {}]
  %s1 = inlined_call_operand.vmem [shape: f32[128,8], index: 1, kind: input, shape index: {}]
  %s2 = inlined_call_operand.vmem [shape: f32[128,1], index: 2, kind: input, shape index: {}]
  %s3 = inlined_call_operand.vmem [shape: f32[4,128], index: 3, kind: input, shape index: {}]
  %s4 = inlined_call_operand.vmem [shape: f32[4,1], index: 4, kind: input, shape index: {}]
  %s5 = inlined_call_operand.vmem [shape: f32[4,128], index: 5, kind: output, shape index: {}]
  %s6 = sld [smem:[#allocation0]]
  $region30: #{_network_forward_impl.1} parent=0
    _
  %s8 = ssub.s32 1, %s6
  %s9 = scalar_select 0, %s8, %s6
  // Predicated region
  $region2: #{_network_forward_impl.1} parent=0 // pred_check
    _
  $region3: #{_network_forward_impl.1} parent=0 // pred_check_branch
    %11 = sbr.rel (0) target = $region5
  $region4: #{_network_forward_impl.1} parent=0 // pred_region
    _
  $region5: #{_network_forward_impl.1} parent=0 // pred_fallthru
    _
  // Predicated region
  $region6: #{_network_forward_impl.1} parent=0 // pred_check
    _
  $region7: #{_network_forward_impl.1} parent=0 // pred_check_branch
    %13 = sbr.rel (0) target = $region9
  $region8: #{_network_forward_impl.1} parent=0 // pred_region
    _
  $region9: #{_network_forward_impl.1} parent=0 // pred_fallthru
    _
  // Predicated region
  $region10: #{_network_forward_impl.1} parent=0 // pred_check
    _
  $region11: #{_network_forward_impl.1} parent=0 // pred_check_branch
    %15 = sbr.rel (0) target = $region13
  $region12: #{_network_forward_impl.1} parent=0 // pred_region
    _
  $region13: #{_network_forward_impl.1} parent=0 // pred_fallthru
    _
  // Predicated region
  $region14: #{_network_forward_impl.1} parent=0 // pred_check
    _
  $region15: #{_network_forward_impl.1} parent=0 // pred_check_branch
    %17 = sbr.rel (0) target = $region17
  $region16: #{_network_forward_impl.1} parent=0 // pred_region
    _
  $region17: #{_network_forward_impl.1} parent=0 // pred_fallthru
    _
  // Predicated region
  $region18: #{_network_forward_impl.1} parent=0 // pred_check
    _
  $region19: #{_network_forward_impl.1} parent=0 // pred_check_branch
    %19 = sbr.rel (0) target = $region21
  $region20: #{_network_forward_impl.1} parent=0 // pred_region
    _
  $region21: #{_network_forward_impl.1} parent=0 // pred_fallthru
    _
  %v20 = vld [vmem:[%s1] sm:$0xff]
  %v21 = vld [vmem:[%s1 + $0x8] sm:$0xff]
  %v22 = vld [vmem:[%s1 + $0x10] sm:$0xff]
  %v23 = vld [vmem:[%s1 + $0x18] sm:$0xff]
  %v24 = vld [vmem:[%s1 + $0x20] sm:$0xff]
  %v25 = vld [vmem:[%s1 + $0x28] sm:$0xff]
  %v26 = vld [vmem:[%s1 + $0x30] sm:$0xff]
  %v27 = vld [vmem:[%s1 + $0x38] sm:$0xff]
  %v28 = vld [vmem:[%s1 + $0x40] sm:$0xff]
  %v29 = vld [vmem:[%s1 + $0x48] sm:$0xff]
  %v30 = vld [vmem:[%s1 + $0x50] sm:$0xff]
  %v31 = vld [vmem:[%s1 + $0x58] sm:$0xff]
  %v32 = vld [vmem:[%s1 + $0x60] sm:$0xff]
  %v33 = vld [vmem:[%s1 + $0x68] sm:$0xff]
  %v34 = vld [vmem:[%s1 + $0x70] sm:$0xff]
  %v35 = vld [vmem:[%s1 + $0x78] sm:$0xff]
  %v36 = vld [vmem:[%s3] sm:$0xf]
  %v37 = vld [vmem:[%s2] sm:$0xff]
  %v38 = vld [vmem:[%s2 + $0x8] sm:$0xff]
  %v39 = vld [vmem:[%s2 + $0x10] sm:$0xff]
  %v40 = vld [vmem:[%s2 + $0x18] sm:$0xff]
  %v41 = vld [vmem:[%s2 + $0x20] sm:$0xff]
  %v42 = vld [vmem:[%s2 + $0x28] sm:$0xff]
  %v43 = vld [vmem:[%s2 + $0x30] sm:$0xff]
  %v44 = vld [vmem:[%s2 + $0x38] sm:$0xff]
  %v45 = vld [vmem:[%s2 + $0x40] sm:$0xff]
  %v46 = vld [vmem:[%s2 + $0x48] sm:$0xff]
  %v47 = vld [vmem:[%s2 + $0x50] sm:$0xff]
  %v48 = vld [vmem:[%s2 + $0x58] sm:$0xff]
  %v49 = vld [vmem:[%s2 + $0x60] sm:$0xff]
  %v50 = vld [vmem:[%s2 + $0x68] sm:$0xff]
  %v51 = vld [vmem:[%s2 + $0x70] sm:$0xff]
  %v52 = vld [vmem:[%s2 + $0x78] sm:$0xff]
  %v53 = vld [vmem:[%s4] sm:$0xf]
  %v54 = vld [vmem:[%s0] sm:$0xff]
  %56 = vset.pattern.permute.xlu0 0
  %57 = vperm.xlu0 %56, %v37
  %v58 = vpop.permute.xlu0 %57
  %61 = vset.pattern.permute.xlu0 0
  %62 = vperm.xlu0 %61, %v38
  %v63 = vpop.permute.xlu0 %62
  %66 = vset.pattern.permute.xlu0 0
  %67 = vperm.xlu0 %66, %v39
  %v68 = vpop.permute.xlu0 %67
  %71 = vset.pattern.permute.xlu0 0
  %72 = vperm.xlu0 %71, %v40
  %v73 = vpop.permute.xlu0 %72
  %76 = vset.pattern.permute.xlu0 0
  %77 = vperm.xlu0 %76, %v41
  %v78 = vpop.permute.xlu0 %77
  %81 = vset.pattern.permute.xlu0 0
  %82 = vperm.xlu0 %81, %v42
  %v83 = vpop.permute.xlu0 %82
  %86 = vset.pattern.permute.xlu0 0
  %87 = vperm.xlu0 %86, %v43
  %v88 = vpop.permute.xlu0 %87
  %91 = vset.pattern.permute.xlu0 0
  %92 = vperm.xlu0 %91, %v44
  %v93 = vpop.permute.xlu0 %92
  %96 = vset.pattern.permute.xlu0 0
  %97 = vperm.xlu0 %96, %v45
  %v98 = vpop.permute.xlu0 %97
  %101 = vset.pattern.permute.xlu0 0
  %102 = vperm.xlu0 %101, %v46
  %v103 = vpop.permute.xlu0 %102
  %106 = vset.pattern.permute.xlu0 0
  %107 = vperm.xlu0 %106, %v47
  %v108 = vpop.permute.xlu0 %107
  %111 = vset.pattern.permute.xlu0 0
  %112 = vperm.xlu0 %111, %v48
  %v113 = vpop.permute.xlu0 %112
  %116 = vset.pattern.permute.xlu0 0
  %117 = vperm.xlu0 %116, %v49
  %v118 = vpop.permute.xlu0 %117
  %121 = vset.pattern.permute.xlu0 0
  %122 = vperm.xlu0 %121, %v50
  %v123 = vpop.permute.xlu0 %122
  %126 = vset.pattern.permute.xlu0 0
  %127 = vperm.xlu0 %126, %v51
  %v128 = vpop.permute.xlu0 %127
  %131 = vset.pattern.permute.xlu0 0
  %132 = vperm.xlu0 %131, %v52
  %v133 = vpop.permute.xlu0 %132
  %vm135 = vcmask 64512
  %v137 = vsel %vm135, %v20, 0
  %v140 = vsel %vm135, %v21, 0
  %v143 = vsel %vm135, %v22, 0
  %v146 = vsel %vm135, %v23, 0
  %v149 = vsel %vm135, %v24, 0
  %v152 = vsel %vm135, %v25, 0
  %v155 = vsel %vm135, %v26, 0
  %v158 = vsel %vm135, %v27, 0
  %v161 = vsel %vm135, %v28, 0
  %v164 = vsel %vm135, %v29, 0
  %v167 = vsel %vm135, %v30, 0
  %v170 = vsel %vm135, %v31, 0
  %v173 = vsel %vm135, %v32, 0
  %v176 = vsel %vm135, %v33, 0
  %v179 = vsel %vm135, %v34, 0
  %v182 = vsel %vm135, %v35, 0
  %184 = vmatprep.subr.mxu0 0.0
  %185 = vmatpush1.msra.mxu0 %v54
  %186 = vmatprep.subr.mxu0 0.0
  %187 = vmatpush1.msra.mxu0 0.0
  %188 = vmatprep.subr.mxu0 0.0
  %189 = vmatpush1.msra.mxu0 0.0
  %190 = vmatprep.subr.mxu0 0.0
  %191 = vmatpush1.msra.mxu0 0.0
  %192 = vmatprep.subr.mxu0 0.0
  %193 = vmatpush1.msra.mxu0 0.0
  %194 = vmatprep.subr.mxu0 0.0
  %195 = vmatpush1.msra.mxu0 0.0
  %196 = vmatprep.subr.mxu0 0.0
  %197 = vmatpush1.msra.mxu0 0.0
  %198 = vmatprep.subr.mxu0 0.0
  %199 = vmatpush1.msra.mxu0 0.0
  %200 = vmatprep.subr.mxu0 0.0
  %201 = vmatpush1.msra.mxu0 0.0
  %202 = vmatprep.subr.mxu0 0.0
  %203 = vmatpush1.msra.mxu0 0.0
  %204 = vmatprep.subr.mxu0 0.0
  %205 = vmatpush1.msra.mxu0 0.0
  %206 = vmatprep.subr.mxu0 0.0
  %207 = vmatpush1.msra.mxu0 0.0
  %208 = vmatprep.subr.mxu0 0.0
  %209 = vmatpush1.msra.mxu0 0.0
  %210 = vmatprep.subr.mxu0 0.0
  %211 = vmatpush1.msra.mxu0 0.0
  %212 = vmatprep.subr.mxu0 0.0
  %213 = vmatpush1.msra.mxu0 0.0
  %214 = vmatprep.subr.mxu0 0.0
  %215 = vmatpush1.msra.mxu0 0.0
  %216 = vmatprep.subr.mxu0 0.0
  %217 = vmatpush1.msra.mxu0 0.0
  %218 = vmatprep.subr.mxu0 0.0
  %219 = vmatpush1.msra.mxu0 0.0
  %220 = vmatprep.subr.mxu0 0.0
  %221 = vmatpush1.msra.mxu0 0.0
  %222 = vmatprep.subr.mxu0 0.0
  %223 = vmatpush1.msra.mxu0 0.0
  %224 = vmatprep.subr.mxu0 0.0
  %225 = vmatpush1.msra.mxu0 0.0
  %226 = vmatprep.subr.mxu0 0.0
  %227 = vmatpush1.msra.mxu0 0.0
  %228 = vmatprep.subr.mxu0 0.0
  %229 = vmatpush1.msra.mxu0 0.0
  %230 = vmatprep.subr.mxu0 0.0
  %231 = vmatpush1.msra.mxu0 0.0
  %232 = vmatprep.subr.mxu0 0.0
  %233 = vmatpush1.msra.mxu0 0.0
  %234 = vmatprep.subr.mxu0 0.0
  %235 = vmatpush1.msra.mxu0 0.0
  %236 = vmatprep.subr.mxu0 0.0
  %237 = vmatpush1.msra.mxu0 0.0
  %238 = vmatprep.subr.mxu0 0.0
  %239 = vmatpush1.msra.mxu0 0.0
  %240 = vmatprep.subr.mxu0 0.0
  %241 = vmatpush1.msra.mxu0 0.0
  %242 = vmatprep.subr.mxu0 0.0
  %243 = vmatpush1.msra.mxu0 0.0
  %244 = vmatprep.subr.mxu0 0.0
  %245 = vmatpush1.msra.mxu0 0.0
  %246 = vmatprep.subr.mxu0 0.0
  %247 = vmatpush1.msra.mxu0 0.0
  %248 = vmatprep.mubr.f32.mxu0 0.0
  %249 = vmatmul.mubr.f32.gmra.mrb[0].mxu0 %v137
  %v250 = vpop.f32.mrb[0].mxu0
  %v251 = vadd.f32 %v58, %v250
  %v252 = vpop.f32.mrb[0].mxu0
  %253 = vmatprep.mubr.f32.mxu0 0.0
  %254 = vmatmul.mubr.f32.gmra.mrb[0].mxu0 %v140
  %v255 = vpop.f32.mrb[0].mxu0
  %v256 = vadd.f32 %v63, %v255
  %v257 = vpop.f32.mrb[0].mxu0
  %258 = vmatprep.mubr.f32.mxu0 0.0
  %259 = vmatmul.mubr.f32.gmra.mrb[0].mxu0 %v143
  %v260 = vpop.f32.mrb[0].mxu0
  %v261 = vadd.f32 %v68, %v260
  %v262 = vpop.f32.mrb[0].mxu0
  %263 = vmatprep.mubr.f32.mxu0 0.0
  %264 = vmatmul.mubr.f32.gmra.mrb[0].mxu0 %v146
  %v265 = vpop.f32.mrb[0].mxu0
  %v266 = vadd.f32 %v73, %v265
  %v267 = vpop.f32.mrb[0].mxu0
  %268 = vmatprep.mubr.f32.mxu0 0.0
  %269 = vmatmul.mubr.f32.gmra.mrb[0].mxu0 %v149
  %v270 = vpop.f32.mrb[0].mxu0
  %v271 = vadd.f32 %v78, %v270
  %v272 = vpop.f32.mrb[0].mxu0
  %273 = vmatprep.mubr.f32.mxu0 0.0
  %274 = vmatmul.mubr.f32.gmra.mrb[0].mxu0 %v152
  %v275 = vpop.f32.mrb[0].mxu0
  %v276 = vadd.f32 %v83, %v275
  %v277 = vpop.f32.mrb[0].mxu0
  %278 = vmatprep.mubr.f32.mxu0 0.0
  %279 = vmatmul.mubr.f32.gmra.mrb[0].mxu0 %v155
  %v280 = vpop.f32.mrb[0].mxu0
  %v281 = vadd.f32 %v88, %v280
  %v282 = vpop.f32.mrb[0].mxu0
  %283 = vmatprep.mubr.f32.mxu0 0.0
  %284 = vmatmul.mubr.f32.gmra.mrb[0].mxu0 %v158
  %v285 = vpop.f32.mrb[0].mxu0
  %v286 = vadd.f32 %v93, %v285
  %v287 = vpop.f32.mrb[0].mxu0
  %288 = vmatprep.mubr.f32.mxu0 0.0
  %289 = vmatmul.mubr.f32.gmra.mrb[0].mxu0 %v161
  %v290 = vpop.f32.mrb[0].mxu0
  %v291 = vadd.f32 %v98, %v290
  %v292 = vpop.f32.mrb[0].mxu0
  %293 = vmatprep.mubr.f32.mxu0 0.0
  %294 = vmatmul.mubr.f32.gmra.mrb[0].mxu0 %v164
  %v295 = vpop.f32.mrb[0].mxu0
  %v296 = vadd.f32 %v103, %v295
  %v297 = vpop.f32.mrb[0].mxu0
  %298 = vmatprep.mubr.f32.mxu0 0.0
  %299 = vmatmul.mubr.f32.gmra.mrb[0].mxu0 %v167
  %v300 = vpop.f32.mrb[0].mxu0
  %v301 = vadd.f32 %v108, %v300
  %v302 = vpop.f32.mrb[0].mxu0
  %303 = vmatprep.mubr.f32.mxu0 0.0
  %304 = vmatmul.mubr.f32.gmra.mrb[0].mxu0 %v170
  %v305 = vpop.f32.mrb[0].mxu0
  %v306 = vadd.f32 %v113, %v305
  %v307 = vpop.f32.mrb[0].mxu0
  %308 = vmatprep.mubr.f32.mxu0 0.0
  %309 = vmatmul.mubr.f32.gmra.mrb[0].mxu0 %v173
  %v310 = vpop.f32.mrb[0].mxu0
  %v311 = vadd.f32 %v118, %v310
  %v312 = vpop.f32.mrb[0].mxu0
  %313 = vmatprep.mubr.f32.mxu0 0.0
  %314 = vmatmul.mubr.f32.gmra.mrb[0].mxu0 %v176
  %v315 = vpop.f32.mrb[0].mxu0
  %v316 = vadd.f32 %v123, %v315
  %v317 = vpop.f32.mrb[0].mxu0
  %318 = vmatprep.mubr.f32.mxu0 0.0
  %319 = vmatmul.mubr.f32.gmra.mrb[0].mxu0 %v179
  %v320 = vpop.f32.mrb[0].mxu0
  %v321 = vadd.f32 %v128, %v320
  %v322 = vpop.f32.mrb[0].mxu0
  %323 = vmatprep.mubr.f32.mxu0 0.0
  %324 = vmatmul.mubr.f32.gmra.mrb[0].mxu0 %v182
  %v325 = vpop.f32.mrb[0].mxu0
  %v326 = vadd.f32 %v133, %v325
  %v327 = vpop.f32.mrb[0].mxu0
  %328 = vdwg.mxu0
  %v329 = vmax.f32 %v251, 0.0
  %v330 = vmax.f32 %v256, 0.0
  %v331 = vmax.f32 %v261, 0.0
  %v332 = vmax.f32 %v266, 0.0
  %v333 = vmax.f32 %v271, 0.0
  %v334 = vmax.f32 %v276, 0.0
  %v335 = vmax.f32 %v281, 0.0
  %v336 = vmax.f32 %v286, 0.0
  %v337 = vmax.f32 %v291, 0.0
  %v338 = vmax.f32 %v296, 0.0
  %v339 = vmax.f32 %v301, 0.0
  %v340 = vmax.f32 %v306, 0.0
  %v341 = vmax.f32 %v311, 0.0
  %v342 = vmax.f32 %v316, 0.0
  %v343 = vmax.f32 %v321, 0.0
  %v344 = vmax.f32 %v326, 0.0
  %346 = vset.pattern.permute.xlu0 0
  %347 = vperm.xlu0 %346, %v53
  %v348 = vpop.permute.xlu0 %347
  %350 = vmatprep.subr.mxu0 0.0
  %351 = vmatpush1.msra.mxu0 %v329
  %352 = vmatprep.subr.mxu0 0.0
  %353 = vmatpush1.msra.mxu0 %v330
  %354 = vmatprep.subr.mxu0 0.0
  %355 = vmatpush1.msra.mxu0 %v331
  %356 = vmatprep.subr.mxu0 0.0
  %357 = vmatpush1.msra.mxu0 %v332
  %358 = vmatprep.subr.mxu0 0.0
  %359 = vmatpush1.msra.mxu0 %v333
  %360 = vmatprep.subr.mxu0 0.0
  %361 = vmatpush1.msra.mxu0 %v334
  %362 = vmatprep.subr.mxu0 0.0
  %363 = vmatpush1.msra.mxu0 %v335
  %364 = vmatprep.subr.mxu0 0.0
  %365 = vmatpush1.msra.mxu0 %v336
  %366 = vmatprep.subr.mxu0 0.0
  %367 = vmatpush1.msra.mxu0 %v337
  %368 = vmatprep.subr.mxu0 0.0
  %369 = vmatpush1.msra.mxu0 %v338
  %370 = vmatprep.subr.mxu0 0.0
  %371 = vmatpush1.msra.mxu0 %v339
  %372 = vmatprep.subr.mxu0 0.0
  %373 = vmatpush1.msra.mxu0 %v340
  %374 = vmatprep.subr.mxu0 0.0
  %375 = vmatpush1.msra.mxu0 %v341
  %376 = vmatprep.subr.mxu0 0.0
  %377 = vmatpush1.msra.mxu0 %v342
  %378 = vmatprep.subr.mxu0 0.0
  %379 = vmatpush1.msra.mxu0 %v343
  %380 = vmatprep.subr.mxu0 0.0
  %381 = vmatpush1.msra.mxu0 %v344
  %382 = vmatprep.subr.mxu0 0.0
  %383 = vmatpush1.msra.mxu0 0.0
  %384 = vmatprep.subr.mxu0 0.0
  %385 = vmatpush1.msra.mxu0 0.0
  %386 = vmatprep.subr.mxu0 0.0
  %387 = vmatpush1.msra.mxu0 0.0
  %388 = vmatprep.subr.mxu0 0.0
  %389 = vmatpush1.msra.mxu0 0.0
  %390 = vmatprep.subr.mxu0 0.0
  %391 = vmatpush1.msra.mxu0 0.0
  %392 = vmatprep.subr.mxu0 0.0
  %393 = vmatpush1.msra.mxu0 0.0
  %394 = vmatprep.subr.mxu0 0.0
  %395 = vmatpush1.msra.mxu0 0.0
  %396 = vmatprep.subr.mxu0 0.0
  %397 = vmatpush1.msra.mxu0 0.0
  %398 = vmatprep.subr.mxu0 0.0
  %399 = vmatpush1.msra.mxu0 0.0
  %400 = vmatprep.subr.mxu0 0.0
  %401 = vmatpush1.msra.mxu0 0.0
  %402 = vmatprep.subr.mxu0 0.0
  %403 = vmatpush1.msra.mxu0 0.0
  %404 = vmatprep.subr.mxu0 0.0
  %405 = vmatpush1.msra.mxu0 0.0
  %406 = vmatprep.subr.mxu0 0.0
  %407 = vmatpush1.msra.mxu0 0.0
  %408 = vmatprep.subr.mxu0 0.0
  %409 = vmatpush1.msra.mxu0 0.0
  %410 = vmatprep.subr.mxu0 0.0
  %411 = vmatpush1.msra.mxu0 0.0
  %412 = vmatprep.subr.mxu0 0.0
  %413 = vmatpush1.msra.mxu0 0.0
  %414 = vmatprep.mubr.f32.mxu0 0.0
  %415 = vmatmul.mubr.f32.gmra.mrb[0].mxu0 %v36
  %v416 = vpop.f32.mrb[0].mxu0
  %v417 = vadd.f32 %v348, %v416
  %v418 = vpop.f32.mrb[0].mxu0
  %419 = vdwg.mxu0
  %420 = vst [vmem:[%s5] sm:$0xf] %v417
  // Predicated region
  $region22: #{_network_forward_impl.1} parent=0 // pred_check
    _
  $region23: #{_network_forward_impl.1} parent=0 // pred_check_branch
    %422 = sbr.rel (0) target = $region25
  $region24: #{_network_forward_impl.1} parent=0 // pred_region
    _
  $region25: #{_network_forward_impl.1} parent=0 // pred_fallthru
    _
  // Predicated region
  $region26: #{_network_forward_impl.1} parent=0 // pred_check
    _
  $region27: #{_network_forward_impl.1} parent=0 // pred_check_branch
    %424 = sbr.rel (0) target = $region29
  $region28: #{_network_forward_impl.1} parent=0 // pred_region
    _
  $region29: #{_network_forward_impl.1} parent=0 // pred_fallthru
    _

</llo_original>
